<compile_context>
chip_gen: v7x
topology: tpu7x:2x2x1
jax: 0.10.0
libtpu: 0.0.40
codegen_flags: <defaults>
</compile_context>

<pallas_src>
import functools

import jax
import jax.numpy as jnp
from jax import lax
from jax.experimental import pallas as pl
from jax.experimental.pallas import tpu as pltpu

LANE = 128


def _round_up(n, m):
    return ((n + m - 1) // m) * m


def _bottleneck1d_kernel(x_ref,
                         s1_ref, t1_ref,      # BN1 folded scale/shift (1, Cp) f32
                         w1_ref,              # conv 1x1: (Cp, Pp) bf16
                         s2_ref, t2_ref,      # BN2 folded scale/shift (+b1) (1, Pp) f32
                         w3_ref,              # conv k=3 stacked: (3*Pp, Pp) bf16
                         s3_ref, t3_ref,      # BN3 folded scale/shift (+b3) (1, Pp) f32
                         w2_ref,              # conv 1x1: (Pp, Cp) bf16
                         b2_ref,              # final bias (1, Cp) f32
                         o_ref, *, L):
    x = x_ref[...]                                                    # (TR, Cp) f32

    # BN1 + ReLU in f32, then bf16 for the MXU.
    h = jnp.maximum(x * s1_ref[...] + t1_ref[...], 0.0).astype(jnp.bfloat16)

    # Conv1d(k=1): (TR, Cp) @ (Cp, Pp), f32 accumulation.
    h1 = jnp.dot(h, w1_ref[...], preferred_element_type=jnp.float32)

    # BN2 (conv bias pre-folded into the shift) + ReLU, back to bf16.
    h1 = jnp.maximum(h1 * s2_ref[...] + t2_ref[...], 0.0).astype(jnp.bfloat16)

    # Conv1d(k=3, padding=1): rows shifted by +-1 inside each length-L sample.
    # Tiles hold whole samples, so masking in-sample position 0 / L-1 covers every
    # boundary (tile edges and sample-to-sample seams inside the tile).
    TR, Pp = h1.shape
    pos = lax.broadcasted_iota(jnp.int32, (TR, Pp), 0) % L
    zrow = jnp.zeros((1, Pp), h1.dtype)
    h_prev = jnp.concatenate([zrow, h1[:-1, :]], axis=0)              # h1[l-1]
    h_next = jnp.concatenate([h1[1:, :], zrow], axis=0)               # h1[l+1]
    h_prev = h_prev * (pos != 0).astype(h1.dtype)
    h_next = h_next * (pos != L - 1).astype(h1.dtype)

    # Single stacked matmul: (TR, 3*Pp) @ (3*Pp, Pp).
    hcat = jnp.concatenate([h_prev, h1, h_next], axis=1)
    h2 = jnp.dot(hcat, w3_ref[...], preferred_element_type=jnp.float32)

    # BN3 (conv bias pre-folded) + ReLU, bf16 for the last matmul.
    h2 = jnp.maximum(h2 * s3_ref[...] + t3_ref[...], 0.0).astype(jnp.bfloat16)

    # Conv1d(k=1) back to C channels + bias + residual (f32).
    y = jnp.dot(h2, w2_ref[...], preferred_element_type=jnp.float32) + b2_ref[...]
    o_ref[...] = x + y


def bottleneck1d_forward(x_ncl, params, *, target_rows=256):
    """x_ncl: (N, C, L) float32; params: output of pack_params()."""
    N, C, L = x_ncl.shape
    Cp, Pp = params["Cp"], params["Pp"]
    assert params["C"] == C, "channel count mismatch with packed params"

    # NCL -> flattened channels-last rows (matches the PyTorch interface).
    x_flat = jnp.transpose(x_ncl, (0, 2, 1)).reshape(N * L, C)

    # Row tile = whole samples (so the k=3 boundary masks stay per-sample),
    # sized to fill the MXU M dimension; padded so TR is sublane-aligned.
    spb = max(1, min(N, max(1, target_rows // L)))      # samples per row block
    while (spb * L) % 8 != 0:
        spb += 1
    TR = spb * L
    n_blocks = -(-N // spb)
    rows_pad = n_blocks * TR

    # Zero-pad rows (whole fake samples) and channels up to the lane width.
    x_flat = jnp.pad(x_flat, ((0, rows_pad - N * L), (0, Cp - C)))

    weight_order = ["s1", "t1", "w1", "s2", "t2", "w3", "s3", "t3", "w2", "b2"]
    weight_args = [params[k] for k in weight_order]
    weight_specs = [pl.BlockSpec(params[k].shape, lambda i: (0, 0)) for k in weight_order]

    kernel = functools.partial(_bottleneck1d_kernel, L=L)

    out_flat = pl.pallas_call(
        kernel,
        out_shape=jax.ShapeDtypeStruct((rows_pad, Cp), jnp.float32),
        grid_spec=pltpu.PrefetchScalarGridSpec(
            num_scalar_prefetch=0,
            grid=(n_blocks,),
            in_specs=[pl.BlockSpec((TR, Cp), lambda i: (i, 0))] + weight_specs,
            out_specs=pl.BlockSpec((TR, Cp), lambda i: (i, 0)),
        ),
        input_output_aliases={0: 0},   # write the result over the padded input buffer
        compiler_params=pltpu.CompilerParams(
            dimension_semantics=("parallel",),
            vmem_limit_bytes=48 * 1024 * 1024,   # well under v7x's 64 MiB physical VMEM
        ),
    )(x_flat, *weight_args)

    out = out_flat[: N * L, :C].reshape(N, L, C)
    return jnp.transpose(out, (0, 2, 1))                              # back to (N, C, L)


def make_raw_params(key, inplanes, outplanes):
    """Deterministic synthetic parameters in PyTorch layout (conv weights (out, in, k))."""
    planes = outplanes // 2
    ks = jax.random.split(key, 9)

    def bn_params(k, ch):
        kg, kb, km, kv = jax.random.split(k, 4)
        gamma = jax.random.normal(kg, (ch,)) * 0.1 + 1.0
        beta = jax.random.normal(kb, (ch,)) * 0.1
        mean = jax.random.normal(km, (ch,)) * 0.1
        var = jax.random.uniform(kv, (ch,), minval=0.5, maxval=1.5)
        return gamma, beta, mean, var

    return dict(
        bn1=bn_params(ks[0], inplanes),
        w1=jax.random.normal(ks[1], (planes, inplanes, 1)) * 0.1,
        b1=jax.random.normal(ks[2], (planes,)) * 0.1,
        bn2=bn_params(ks[3], planes),
        w3=jax.random.normal(ks[4], (planes, planes, 3)) * 0.1,
        b3=jax.random.normal(ks[5], (planes,)) * 0.1,
        bn3=bn_params(ks[6], planes),
        w2=jax.random.normal(ks[7], (outplanes, planes, 1)) * 0.1,
        b2=jax.random.normal(ks[8], (outplanes,)) * 0.1,
    )


def pack_params(raw, eps=1e-5):
    """Fold BN (inference mode) + conv biases, transpose to matmul form, pad to lanes, bf16 weights."""
    C = raw["bn1"][0].shape[0]
    P = raw["w1"].shape[0]
    outC = raw["w2"].shape[0]
    assert outC == C, "residual add requires inplanes == outplanes"
    Cp = _round_up(C, LANE)
    Pp = _round_up(P, LANE)

    def fold(bn):
        g, b, m, v = bn
        s = g / jnp.sqrt(v + eps)
        return s, b - m * s

    s1, t1 = fold(raw["bn1"])
    s2, t2 = fold(raw["bn2"])
    s3, t3 = fold(raw["bn3"])
    t2 = t2 + s2 * raw["b1"]          # fold conv1 bias into BN2 shift
    t3 = t3 + s3 * raw["b3"]          # fold conv3 bias into BN3 shift

    def padvec(v, n):
        return jnp.pad(v, (0, n - v.shape[0])).reshape(1, n).astype(jnp.float32)

    def padmat(m, r, c):
        return jnp.pad(m, ((0, r - m.shape[0]), (0, c - m.shape[1]))).astype(jnp.bfloat16)

    w1 = padmat(raw["w1"][:, :, 0].T, Cp, Pp)                         # (Cp, Pp)
    w3 = jnp.concatenate(                                             # (3*Pp, Pp): taps l-1, l, l+1
        [padmat(raw["w3"][:, :, k].T, Pp, Pp) for k in range(3)], axis=0)
    w2 = padmat(raw["w2"][:, :, 0].T, Pp, Cp)                         # (Pp, Cp)

    return dict(
        s1=padvec(s1, Cp), t1=padvec(t1, Cp),
        w1=w1,
        s2=padvec(s2, Pp), t2=padvec(t2, Pp),
        w3=w3,
        s3=padvec(s3, Pp), t3=padvec(t3, Pp),
        w2=w2,
        b2=padvec(raw["b2"], Cp),
        C=C, P=P, Cp=Cp, Pp=Pp,
    )


def reference_forward(x_ncl, raw, eps=1e-5):
    """Pure-JAX f32 reference computed directly from the PyTorch-layout parameters."""
    def bn(x, g, b, m, v):
        return (x - m[None, :, None]) / jnp.sqrt(v[None, :, None] + eps) \
            * g[None, :, None] + b[None, :, None]

    def conv1(x, w, b):                       # w: (O, I, 1)
        return jnp.einsum("ncl,oc->nol", x, w[:, :, 0]) + b[None, :, None]

    def conv3(x, w, b):                       # w: (O, I, 3), padding=1
        xp = jnp.pad(x, ((0, 0), (0, 0), (1, 1)))
        return (jnp.einsum("ncl,oc->nol", xp[:, :, 0:-2], w[:, :, 0])
                + jnp.einsum("ncl,oc->nol", xp[:, :, 1:-1], w[:, :, 1])
                + jnp.einsum("ncl,oc->nol", xp[:, :, 2:], w[:, :, 2])
                + b[None, :, None])

    h = jax.nn.relu(bn(x_ncl, *raw["bn1"]))
    h = conv1(h, raw["w1"], raw["b1"])
    h = jax.nn.relu(bn(h, *raw["bn2"]))
    h = conv3(h, raw["w3"], raw["b3"])
    h = jax.nn.relu(bn(h, *raw["bn3"]))
    y = conv1(h, raw["w2"], raw["b2"])
    return x_ncl + y


if __name__ == "__main__":
    N, C, L = 2, 8, 16          # inplanes == outplanes == 8 (residual), length 16
    key = jax.random.PRNGKey(0)
    kx, kp = jax.random.split(key)
    x = jax.random.normal(kx, (N, C, L), dtype=jnp.float32)

    raw = make_raw_params(kp, inplanes=C, outplanes=C)
    packed = pack_params(raw)

    out = bottleneck1d_forward(x, packed)
    out = jax.block_until_ready(out)

    ref = reference_forward(x, raw)
    assert out.shape == (N, C, L)
    max_err = float(jnp.max(jnp.abs(out - ref)))
    # bf16 matmuls -> tolerance loosened relative to a pure-f32 comparison.
    assert jnp.allclose(out, ref, atol=3e-2, rtol=3e-2), \
        f"Pallas output mismatch vs reference (max abs err {max_err})"
    print("KERNEL_OK")
</pallas_src>

<mosaic_0001>
module attributes {stable_mosaic.version = 11 : i64} {
  func.func @_bottleneck1d_kernel(%arg0: i32, %arg1: memref<32x128xf32, #tpu.memory_space<vmem>>, %arg2: memref<1x128xf32, #tpu.memory_space<vmem>>, %arg3: memref<1x128xf32, #tpu.memory_space<vmem>>, %arg4: memref<128x128xbf16, #tpu.memory_space<vmem>>, %arg5: memref<1x128xf32, #tpu.memory_space<vmem>>, %arg6: memref<1x128xf32, #tpu.memory_space<vmem>>, %arg7: memref<384x128xbf16, #tpu.memory_space<vmem>>, %arg8: memref<1x128xf32, #tpu.memory_space<vmem>>, %arg9: memref<1x128xf32, #tpu.memory_space<vmem>>, %arg10: memref<128x128xbf16, #tpu.memory_space<vmem>>, %arg11: memref<1x128xf32, #tpu.memory_space<vmem>>, %arg12: memref<32x128xf32, #tpu.memory_space<vmem>>) attributes {dimension_semantics = [#tpu.dimension_semantics<parallel>], iteration_bounds = array<i64: 1>, scalar_prefetch = 0 : i64, scratch_operands = 0 : i64, tpu.core_type = #tpu.core_type<tc>, window_params = [{transform_indices = @transform_0, window_bounds = array<i64: 32, 128>}, {pipeline_mode = #tpu.pipeline_mode<synchronous>, transform_indices = @transform_1, window_bounds = array<i64: 1, 128>}, {pipeline_mode = #tpu.pipeline_mode<synchronous>, transform_indices = @transform_2, window_bounds = array<i64: 1, 128>}, {pipeline_mode = #tpu.pipeline_mode<synchronous>, transform_indices = @transform_3, window_bounds = array<i64: 128, 128>}, {pipeline_mode = #tpu.pipeline_mode<synchronous>, transform_indices = @transform_4, window_bounds = array<i64: 1, 128>}, {pipeline_mode = #tpu.pipeline_mode<synchronous>, transform_indices = @transform_5, window_bounds = array<i64: 1, 128>}, {pipeline_mode = #tpu.pipeline_mode<synchronous>, transform_indices = @transform_6, window_bounds = array<i64: 384, 128>}, {pipeline_mode = #tpu.pipeline_mode<synchronous>, transform_indices = @transform_7, window_bounds = array<i64: 1, 128>}, {pipeline_mode = #tpu.pipeline_mode<synchronous>, transform_indices = @transform_8, window_bounds = array<i64: 1, 128>}, {pipeline_mode = #tpu.pipeline_mode<synchronous>, transform_indices = @transform_9, window_bounds = array<i64: 128, 128>}, {pipeline_mode = #tpu.pipeline_mode<synchronous>, transform_indices = @transform_10, window_bounds = array<i64: 1, 128>}, {transform_indices = @transform_11, window_bounds = array<i64: 32, 128>}]} {
    %c0 = arith.constant 0 : index
    %c0_0 = arith.constant 0 : index
    %0 = vector.load %arg1[%c0, %c0_0] : memref<32x128xf32, #tpu.memory_space<vmem>>, vector<32x128xf32>
    %c0_1 = arith.constant 0 : index
    %c0_2 = arith.constant 0 : index
    %1 = vector.load %arg2[%c0_1, %c0_2] : memref<1x128xf32, #tpu.memory_space<vmem>>, vector<1x128xf32>
    %2 = vector.broadcast %1 : vector<1x128xf32> to vector<32x128xf32>
    %3 = arith.mulf %0, %2 : vector<32x128xf32>
    %c0_3 = arith.constant 0 : index
    %c0_4 = arith.constant 0 : index
    %4 = vector.load %arg3[%c0_3, %c0_4] : memref<1x128xf32, #tpu.memory_space<vmem>>, vector<1x128xf32>
    %5 = vector.broadcast %4 : vector<1x128xf32> to vector<32x128xf32>
    %6 = arith.addf %3, %5 : vector<32x128xf32>
    %cst = arith.constant 0.000000e+00 : f32
    %7 = vector.broadcast %cst : f32 to vector<32x128xf32>
    %8 = arith.maximumf %6, %7 : vector<32x128xf32>
    %9 = arith.truncf %8 : vector<32x128xf32> to vector<32x128xbf16>
    %c0_5 = arith.constant 0 : index
    %c0_6 = arith.constant 0 : index
    %10 = vector.load %arg4[%c0_5, %c0_6] : memref<128x128xbf16, #tpu.memory_space<vmem>>, vector<128x128xbf16>
    %cst_7 = arith.constant dense<0.000000e+00> : vector<32x128xf32>
    %11 = tpu.matmul %9, %10, %cst_7 {dimension_numbers = #tpu.dot_dimension_numbers<[1], [0], [0], [1], [0, 0, 1, 1], [], []>} : vector<32x128xbf16>, vector<128x128xbf16>, vector<32x128xf32> -> vector<32x128xf32>
    %c0_8 = arith.constant 0 : index
    %c0_9 = arith.constant 0 : index
    %12 = vector.load %arg5[%c0_8, %c0_9] : memref<1x128xf32, #tpu.memory_space<vmem>>, vector<1x128xf32>
    %13 = vector.broadcast %12 : vector<1x128xf32> to vector<32x128xf32>
    %14 = arith.mulf %11, %13 : vector<32x128xf32>
    %c0_10 = arith.constant 0 : index
    %c0_11 = arith.constant 0 : index
    %15 = vector.load %arg6[%c0_10, %c0_11] : memref<1x128xf32, #tpu.memory_space<vmem>>, vector<1x128xf32>
    %16 = vector.broadcast %15 : vector<1x128xf32> to vector<32x128xf32>
    %17 = arith.addf %14, %16 : vector<32x128xf32>
    %cst_12 = arith.constant 0.000000e+00 : f32
    %18 = vector.broadcast %cst_12 : f32 to vector<32x128xf32>
    %19 = arith.maximumf %17, %18 : vector<32x128xf32>
    %20 = arith.truncf %19 : vector<32x128xf32> to vector<32x128xbf16>
    %21 = tpu.iota {dimensions = array<i32: 0>} : vector<32x128xi32>
    %c16_i32 = arith.constant 16 : i32
    %c0_i32 = arith.constant 0 : i32
    %22 = arith.cmpi eq, %c16_i32, %c0_i32 : i32
    %c1_i32 = arith.constant 1 : i32
    %23 = arith.select %22, %c1_i32, %c16_i32 : i32
    %24 = vector.broadcast %23 : i32 to vector<32x128xi32>
    %25 = arith.remsi %21, %24 : vector<32x128xi32>
    %c0_i32_13 = arith.constant 0 : i32
    %26 = vector.broadcast %c0_i32_13 : i32 to vector<32x128xi32>
    %27 = arith.cmpi ne, %25, %26 : vector<32x128xi32>
    %c0_i32_14 = arith.constant 0 : i32
    %28 = vector.broadcast %c0_i32_14 : i32 to vector<32x128xi32>
    %29 = arith.cmpi slt, %25, %28 : vector<32x128xi32>
    %c0_i32_15 = arith.constant 0 : i32
    %30 = arith.cmpi slt, %23, %c0_i32_15 : i32
    %31 = vector.broadcast %30 : i1 to vector<32x128xi1>
    %32 = vector.broadcast %31 : vector<32x128xi1> to vector<32x128xi1>
    %33 = arith.xori %29, %32 : vector<32x128xi1>
    %34 = arith.andi %33, %27 : vector<32x128xi1>
    %35 = vector.broadcast %23 : i32 to vector<32x128xi32>
    %36 = arith.addi %25, %35 : vector<32x128xi32>
    %37 = arith.select %34, %36, %25 : vector<32x128xi1>, vector<32x128xi32>
    %cst_16 = arith.constant 0.000000e+00 : bf16
    %38 = vector.broadcast %cst_16 : bf16 to vector<1x128xbf16>
    %39 = vector.extract_strided_slice %20 {offsets = [0, 0], sizes = [31, 128], strides = [1, 1]} : vector<32x128xbf16> to vector<31x128xbf16>
    %40 = tpu.concatenate %38, %39 in 0 : vector<1x128xbf16>, vector<31x128xbf16> -> vector<32x128xbf16>
    %41 = vector.extract_strided_slice %20 {offsets = [1, 0], sizes = [31, 128], strides = [1, 1]} : vector<32x128xbf16> to vector<31x128xbf16>
    %42 = tpu.concatenate %41, %38 in 0 : vector<31x128xbf16>, vector<1x128xbf16> -> vector<32x128xbf16>
    %c0_i32_17 = arith.constant 0 : i32
    %43 = vector.broadcast %c0_i32_17 : i32 to vector<32x128xi32>
    %44 = arith.cmpi ne, %37, %43 : vector<32x128xi32>
    %45 = arith.extui %44 : vector<32x128xi1> to vector<32x128xi32>
    %46 = arith.sitofp %45 : vector<32x128xi32> to vector<32x128xf32>
    %47 = arith.truncf %46 : vector<32x128xf32> to vector<32x128xbf16>
    %48 = arith.mulf %40, %47 : vector<32x128xbf16>
    %c15_i32 = arith.constant 15 : i32
    %49 = vector.broadcast %c15_i32 : i32 to vector<32x128xi32>
    %50 = arith.cmpi ne, %37, %49 : vector<32x128xi32>
    %51 = arith.extui %50 : vector<32x128xi1> to vector<32x128xi32>
    %52 = arith.sitofp %51 : vector<32x128xi32> to vector<32x128xf32>
    %53 = arith.truncf %52 : vector<32x128xf32> to vector<32x128xbf16>
    %54 = arith.mulf %42, %53 : vector<32x128xbf16>
    %55 = tpu.concatenate %48, %20, %54 in 1 : vector<32x128xbf16>, vector<32x128xbf16>, vector<32x128xbf16> -> vector<32x384xbf16>
    %c0_18 = arith.constant 0 : index
    %c0_19 = arith.constant 0 : index
    %56 = vector.load %arg7[%c0_18, %c0_19] : memref<384x128xbf16, #tpu.memory_space<vmem>>, vector<384x128xbf16>
    %cst_20 = arith.constant dense<0.000000e+00> : vector<32x128xf32>
    %57 = tpu.matmul %55, %56, %cst_20 {dimension_numbers = #tpu.dot_dimension_numbers<[1], [0], [0], [1], [0, 0, 1, 1], [], []>} : vector<32x384xbf16>, vector<384x128xbf16>, vector<32x128xf32> -> vector<32x128xf32>
    %c0_21 = arith.constant 0 : index
    %c0_22 = arith.constant 0 : index
    %58 = vector.load %arg8[%c0_21, %c0_22] : memref<1x128xf32, #tpu.memory_space<vmem>>, vector<1x128xf32>
    %59 = vector.broadcast %58 : vector<1x128xf32> to vector<32x128xf32>
    %60 = arith.mulf %57, %59 : vector<32x128xf32>
    %c0_23 = arith.constant 0 : index
    %c0_24 = arith.constant 0 : index
    %61 = vector.load %arg9[%c0_23, %c0_24] : memref<1x128xf32, #tpu.memory_space<vmem>>, vector<1x128xf32>
    %62 = vector.broadcast %61 : vector<1x128xf32> to vector<32x128xf32>
    %63 = arith.addf %60, %62 : vector<32x128xf32>
    %cst_25 = arith.constant 0.000000e+00 : f32
    %64 = vector.broadcast %cst_25 : f32 to vector<32x128xf32>
    %65 = arith.maximumf %63, %64 : vector<32x128xf32>
    %66 = arith.truncf %65 : vector<32x128xf32> to vector<32x128xbf16>
    %c0_26 = arith.constant 0 : index
    %c0_27 = arith.constant 0 : index
    %67 = vector.load %arg10[%c0_26, %c0_27] : memref<128x128xbf16, #tpu.memory_space<vmem>>, vector<128x128xbf16>
    %cst_28 = arith.constant dense<0.000000e+00> : vector<32x128xf32>
    %68 = tpu.matmul %66, %67, %cst_28 {dimension_numbers = #tpu.dot_dimension_numbers<[1], [0], [0], [1], [0, 0, 1, 1], [], []>} : vector<32x128xbf16>, vector<128x128xbf16>, vector<32x128xf32> -> vector<32x128xf32>
    %c0_29 = arith.constant 0 : index
    %c0_30 = arith.constant 0 : index
    %69 = vector.load %arg11[%c0_29, %c0_30] : memref<1x128xf32, #tpu.memory_space<vmem>>, vector<1x128xf32>
    %70 = vector.broadcast %69 : vector<1x128xf32> to vector<32x128xf32>
    %71 = arith.addf %68, %70 : vector<32x128xf32>
    %72 = arith.addf %0, %71 : vector<32x128xf32>
    %c0_31 = arith.constant 0 : index
    %c0_32 = arith.constant 0 : index
    %73 = vector.load %arg12[%c0_31, %c0_32] : memref<32x128xf32, #tpu.memory_space<vmem>>, vector<32x128xf32>
    tpu.vector_store %arg12[%c0_31, %c0_32], %72 {strides = array<i32>} : memref<32x128xf32, #tpu.memory_space<vmem>>, vector<32x128xf32>,
    return
  }
  func.func @transform_0(%arg0: i32) -> (i32, i32) {
    %c0_i32 = arith.constant 0 : i32
    %c0_i32_0 = arith.constant 0 : i32
    return %arg0, %c0_i32 : i32, i32
  }
  func.func @transform_1(%arg0: i32) -> (i32, i32) {
    %c0_i32 = arith.constant 0 : i32
    %c0_i32_0 = arith.constant 0 : i32
    %c0_i32_1 = arith.constant 0 : i32
    return %c0_i32, %c0_i32_0 : i32, i32
  }
  func.func @transform_2(%arg0: i32) -> (i32, i32) {
    %c0_i32 = arith.constant 0 : i32
    %c0_i32_0 = arith.constant 0 : i32
    %c0_i32_1 = arith.constant 0 : i32
    return %c0_i32, %c0_i32_0 : i32, i32
  }
  func.func @transform_3(%arg0: i32) -> (i32, i32) {
    %c0_i32 = arith.constant 0 : i32
    %c0_i32_0 = arith.constant 0 : i32
    %c0_i32_1 = arith.constant 0 : i32
    return %c0_i32, %c0_i32_0 : i32, i32
  }
  func.func @transform_4(%arg0: i32) -> (i32, i32) {
    %c0_i32 = arith.constant 0 : i32
    %c0_i32_0 = arith.constant 0 : i32
    %c0_i32_1 = arith.constant 0 : i32
    return %c0_i32, %c0_i32_0 : i32, i32
  }
  func.func @transform_5(%arg0: i32) -> (i32, i32) {
    %c0_i32 = arith.constant 0 : i32
    %c0_i32_0 = arith.constant 0 : i32
    %c0_i32_1 = arith.constant 0 : i32
    return %c0_i32, %c0_i32_0 : i32, i32
  }
  func.func @transform_6(%arg0: i32) -> (i32, i32) {
    %c0_i32 = arith.constant 0 : i32
    %c0_i32_0 = arith.constant 0 : i32
    %c0_i32_1 = arith.constant 0 : i32
    return %c0_i32, %c0_i32_0 : i32, i32
  }
  func.func @transform_7(%arg0: i32) -> (i32, i32) {
    %c0_i32 = arith.constant 0 : i32
    %c0_i32_0 = arith.constant 0 : i32
    %c0_i32_1 = arith.constant 0 : i32
    return %c0_i32, %c0_i32_0 : i32, i32
  }
  func.func @transform_8(%arg0: i32) -> (i32, i32) {
    %c0_i32 = arith.constant 0 : i32
    %c0_i32_0 = arith.constant 0 : i32
    %c0_i32_1 = arith.constant 0 : i32
    return %c0_i32, %c0_i32_0 : i32, i32
  }
  func.func @transform_9(%arg0: i32) -> (i32, i32) {
    %c0_i32 = arith.constant 0 : i32
    %c0_i32_0 = arith.constant 0 : i32
    %c0_i32_1 = arith.constant 0 : i32
    return %c0_i32, %c0_i32_0 : i32, i32
  }
  func.func @transform_10(%arg0: i32) -> (i32, i32) {
    %c0_i32 = arith.constant 0 : i32
    %c0_i32_0 = arith.constant 0 : i32
    %c0_i32_1 = arith.constant 0 : i32
    return %c0_i32, %c0_i32_0 : i32, i32
  }
  func.func @transform_11(%arg0: i32) -> (i32, i32) {
    %c0_i32 = arith.constant 0 : i32
    %c0_i32_0 = arith.constant 0 : i32
    return %arg0, %c0_i32 : i32, i32
  }
}

</mosaic_0001>

<llo_original>
// kernel: tpu_custom_call.1
$region0: #{tpu_custom_call.1}
  #allocation0 [shape = 'u32[]', space=smem, size = 0x4, offset = 0x4, fixed_abs, tag = 'smem constant byte address 0x4 - core index']
  #allocation1 [shape = 'u32[144,128]{1,0:T(1,128)}', space=vmem, size = 0x12000, scoped, tag = 'internal scratch']
  %s0 = inlined_call_operand.hbm [shape: f32[32,128], index: 0, kind: input, shape index: {}, may-alias: {0,11}]
  %s1 = inlined_call_operand.vmem [shape: f32[1,128], index: 1, kind: input, shape index: {}]
  %s2 = inlined_call_operand.vmem [shape: f32[1,128], index: 2, kind: input, shape index: {}]
  %s3 = inlined_call_operand.vmem [shape: bf16[128,128], index: 3, kind: input, shape index: {}]
  %s4 = inlined_call_operand.vmem [shape: f32[1,128], index: 4, kind: input, shape index: {}]
  %s5 = inlined_call_operand.vmem [shape: f32[1,128], index: 5, kind: input, shape index: {}]
  %s6 = inlined_call_operand.hbm [shape: bf16[384,128], index: 6, kind: input, shape index: {}]
  %s7 = inlined_call_operand.vmem [shape: f32[1,128], index: 7, kind: input, shape index: {}]
  %s8 = inlined_call_operand.vmem [shape: f32[1,128], index: 8, kind: input, shape index: {}]
  %s9 = inlined_call_operand.hbm [shape: bf16[128,128], index: 9, kind: input, shape index: {}]
  %s10 = inlined_call_operand.vmem [shape: f32[1,128], index: 10, kind: input, shape index: {}]
  %s11 = inlined_call_operand.hbm [shape: f32[32,128], index: 11, kind: output, shape index: {}, may-alias: {0,11}]
  %s12 = sld [smem:[#allocation0]]
  $region66: #{tpu_custom_call.1} parent=0
    _
  %s14 = ssub.s32 1, %s12
  %s15 = scalar_select 0, %s14, %s12
  $region1: #{tpu_custom_call.1} parent=0
    #allocation2 [shape = 'u8[16384]{0}', space=vmem, size = 0x4000, scoped, tag = 'input window, operand 0, single buffered']
    #allocation3 [shape = 's32[1]{0}', space=sflag, size = 0x4, scoped, tag = 'scoped memory for tpu_custom_call.1']
    #allocation4 [shape = 's32[1]{0}', space=sflag, size = 0x4, scoped, tag = 'scoped memory for tpu_custom_call.1']
    #allocation5 [shape = 'u8[98304]{0}', space=vmem, size = 0x18000, scoped, tag = 'input window, operand 6, single buffered']
    #allocation6 [shape = 's32[1]{0}', space=sflag, size = 0x4, scoped, tag = 'scoped memory for tpu_custom_call.1']
    #allocation7 [shape = 'u8[32768]{0}', space=vmem, size = 0x8000, scoped, tag = 'input window, operand 9, single buffered']
    #allocation8 [shape = 'u8[16384]{0}', space=vmem, size = 0x4000, scoped, tag = 'output window, operand 0, single buffered']
    %16 = vsyncpa [#allocation3], 0
    %17 = vsyncpa [#allocation6], 0
    %18 = vsyncpa [#allocation4], 0
    // Predicated region
    $region2: #{tpu_custom_call.1} parent=1 // pred_check
      _
    $region3: #{tpu_custom_call.1} parent=1 // pred_check_branch
      %20 = sbr.rel (0) target = $region5
    $region4: #{tpu_custom_call.1} parent=1 // pred_region
      %s22 = ssub.s32 512, 512
      %23 = vsyncadd [#allocation3], %s22
      %s24 = sshll.u32 [#allocation2], 4
      %s25 = int_to_ptr.vmem [resolvable:$true] %s24
      %30 = dma.hbm_to_vmem [thread:$0]  %s0, 512, %s25, [#allocation3], 128, 128, 8
    $region5: #{tpu_custom_call.1} parent=1 // pred_fallthru
      _
    // Predicated region
    $region6: #{tpu_custom_call.1} parent=1 // pred_check
      _
    $region7: #{tpu_custom_call.1} parent=1 // pred_check_branch
      %32 = sbr.rel (0) target = $region9
    $region8: #{tpu_custom_call.1} parent=1 // pred_region
      _
    $region9: #{tpu_custom_call.1} parent=1 // pred_fallthru
      _
    // Predicated region
    $region10: #{tpu_custom_call.1} parent=1 // pred_check
      _
    $region11: #{tpu_custom_call.1} parent=1 // pred_check_branch
      %34 = sbr.rel (0) target = $region13
    $region12: #{tpu_custom_call.1} parent=1 // pred_region
      _
    $region13: #{tpu_custom_call.1} parent=1 // pred_fallthru
      _
    // Predicated region
    $region14: #{tpu_custom_call.1} parent=1 // pred_check
      _
    $region15: #{tpu_custom_call.1} parent=1 // pred_check_branch
      %36 = sbr.rel (0) target = $region17
    $region16: #{tpu_custom_call.1} parent=1 // pred_region
      _
    $region17: #{tpu_custom_call.1} parent=1 // pred_fallthru
      _
    // Predicated region
    $region18: #{tpu_custom_call.1} parent=1 // pred_check
      _
    $region19: #{tpu_custom_call.1} parent=1 // pred_check_branch
      %38 = sbr.rel (0) target = $region21
    $region20: #{tpu_custom_call.1} parent=1 // pred_region
      _
    $region21: #{tpu_custom_call.1} parent=1 // pred_fallthru
      _
    // Predicated region
    $region22: #{tpu_custom_call.1} parent=1 // pred_check
      _
    $region23: #{tpu_custom_call.1} parent=1 // pred_check_branch
      %40 = sbr.rel (0) target = $region25
    $region24: #{tpu_custom_call.1} parent=1 // pred_region
      _
    $region25: #{tpu_custom_call.1} parent=1 // pred_fallthru
      _
    // Predicated region
    $region26: #{tpu_custom_call.1} parent=1 // pred_check
      _
    $region27: #{tpu_custom_call.1} parent=1 // pred_check_branch
      %42 = sbr.rel (0) target = $region29
    $region28: #{tpu_custom_call.1} parent=1 // pred_region
      %s44 = ssub.s32 3072, 3072
      %45 = vsyncadd [#allocation6], %s44
      %s46 = sshll.u32 [#allocation5], 4
      %s47 = int_to_ptr.vmem [resolvable:$true] %s46
      %52 = dma.hbm_to_vmem [thread:$0]  %s6, 3072, %s47, [#allocation6], 64, 64, 4
    $region29: #{tpu_custom_call.1} parent=1 // pred_fallthru
      _
    // Predicated region
    $region30: #{tpu_custom_call.1} parent=1 // pred_check
      _
    $region31: #{tpu_custom_call.1} parent=1 // pred_check_branch
      %54 = sbr.rel (0) target = $region33
    $region32: #{tpu_custom_call.1} parent=1 // pred_region
      _
    $region33: #{tpu_custom_call.1} parent=1 // pred_fallthru
      _
    // Predicated region
    $region34: #{tpu_custom_call.1} parent=1 // pred_check
      _
    $region35: #{tpu_custom_call.1} parent=1 // pred_check_branch
      %56 = sbr.rel (0) target = $region37
    $region36: #{tpu_custom_call.1} parent=1 // pred_region
      _
    $region37: #{tpu_custom_call.1} parent=1 // pred_fallthru
      _
    // Predicated region
    $region38: #{tpu_custom_call.1} parent=1 // pred_check
      _
    $region39: #{tpu_custom_call.1} parent=1 // pred_check_branch
      %58 = sbr.rel (0) target = $region41
    $region40: #{tpu_custom_call.1} parent=1 // pred_region
      %s60 = ssub.s32 1024, 1024
      %61 = vsyncadd [#allocation6], %s60
      %s62 = sshll.u32 [#allocation7], 4
      %s63 = int_to_ptr.vmem [resolvable:$true] %s62
      %68 = dma.hbm_to_vmem [thread:$0]  %s9, 1024, %s63, [#allocation6], 64, 64, 4
    $region41: #{tpu_custom_call.1} parent=1 // pred_fallthru
      _
    // Predicated region
    $region42: #{tpu_custom_call.1} parent=1 // pred_check
      _
    $region43: #{tpu_custom_call.1} parent=1 // pred_check_branch
      %70 = sbr.rel (0) target = $region45
    $region44: #{tpu_custom_call.1} parent=1 // pred_region
      _
    $region45: #{tpu_custom_call.1} parent=1 // pred_fallthru
      _
    // Predicated region
    $region46: #{tpu_custom_call.1} parent=1 // pred_check
      _
    $region47: #{tpu_custom_call.1} parent=1 // pred_check_branch
      %72 = sbr.rel (0) target = $region49
    $region48: #{tpu_custom_call.1} parent=1 // pred_region
      %73 = dma.done [#allocation3], 512
    $region49: #{tpu_custom_call.1} parent=1 // pred_fallthru
      _
    // Predicated region
    $region50: #{tpu_custom_call.1} parent=1 // pred_check
      _
    $region51: #{tpu_custom_call.1} parent=1 // pred_check_branch
      %75 = sbr.rel (0) target = $region53
    $region52: #{tpu_custom_call.1} parent=1 // pred_region
      %76 = dma.done [#allocation6], 3072
    $region53: #{tpu_custom_call.1} parent=1 // pred_fallthru
      _
    // Predicated region
    $region54: #{tpu_custom_call.1} parent=1 // pred_check
      _
    $region55: #{tpu_custom_call.1} parent=1 // pred_check_branch
      %78 = sbr.rel (0) target = $region57
    $region56: #{tpu_custom_call.1} parent=1 // pred_region
      %79 = dma.done [#allocation6], 1024
    $region57: #{tpu_custom_call.1} parent=1 // pred_fallthru
      _
    %v81 = vld [vmem:[#allocation2] sm:$0xff]
    %v82 = vld [vmem:[#allocation2 + $0x8] sm:$0xff]
    %v83 = vld [vmem:[#allocation2 + $0x10] sm:$0xff]
    %v84 = vld [vmem:[#allocation2 + $0x18] sm:$0xff]
    %v85 = vld [vmem:[%s1] sm:$0x1]
    %v87 = vlaneseq
    %v88 = vshrl.u32 %v87, 7
    %v89 = vsub.s32 0, %v88
    %v90 = vrot.slane %v85, %v89
    %v92 = vmul.f32 %v81, %v90
    %v93 = vmul.f32 %v82, %v90
    %v94 = vmul.f32 %v83, %v90
    %v95 = vmul.f32 %v84, %v90
    %v96 = vld [vmem:[%s2] sm:$0x1]
    %v98 = vlaneseq
    %v99 = vshrl.u32 %v98, 7
    %v100 = vsub.s32 0, %v99
    %v101 = vrot.slane %v96, %v100
    %v103 = vadd.f32 %v92, %v101
    %v104 = vadd.f32 %v93, %v101
    %v105 = vadd.f32 %v94, %v101
    %v106 = vadd.f32 %v95, %v101
    %v107 = vmax.f32 %v103, 0.0
    %v108 = vmax.f32 %v104, 0.0
    %v109 = vmax.f32 %v105, 0.0
    %v110 = vmax.f32 %v106, 0.0
    %v111 = vpack.c.bf16 %v108, %v107
    %v112 = vpack.c.bf16 %v110, %v109
    %v113 = vld [vmem:[%s3] sm:$0xf]
    %v114 = vld [vmem:[%s3 + $0x4] sm:$0xf]
    %v115 = vld [vmem:[%s3 + $0x8] sm:$0xf]
    %v116 = vld [vmem:[%s3 + $0xc] sm:$0xf]
    %v117 = vld [vmem:[%s3 + $0x10] sm:$0xf]
    %v118 = vld [vmem:[%s3 + $0x14] sm:$0xf]
    %v119 = vld [vmem:[%s3 + $0x18] sm:$0xf]
    %v120 = vld [vmem:[%s3 + $0x1c] sm:$0xf]
    %v121 = vld [vmem:[%s3 + $0x20] sm:$0xf]
    %v122 = vld [vmem:[%s3 + $0x24] sm:$0xf]
    %v123 = vld [vmem:[%s3 + $0x28] sm:$0xf]
    %v124 = vld [vmem:[%s3 + $0x2c] sm:$0xf]
    %v125 = vld [vmem:[%s3 + $0x30] sm:$0xf]
    %v126 = vld [vmem:[%s3 + $0x34] sm:$0xf]
    %v127 = vld [vmem:[%s3 + $0x38] sm:$0xf]
    %v128 = vld [vmem:[%s3 + $0x3c] sm:$0xf]
    %v145 = vunpack.c.l.b16 %v113
    %v146 = vunpack.c.l.b16 %v114
    %v147 = vunpack.c.l.b16 %v115
    %v148 = vunpack.c.l.b16 %v116
    %v149 = vunpack.c.l.b16 %v117
    %v150 = vunpack.c.l.b16 %v118
    %v151 = vunpack.c.l.b16 %v119
    %v152 = vunpack.c.l.b16 %v120
    %v153 = vunpack.c.l.b16 %v121
    %v154 = vunpack.c.l.b16 %v122
    %v155 = vunpack.c.l.b16 %v123
    %v156 = vunpack.c.l.b16 %v124
    %v157 = vunpack.c.l.b16 %v125
    %v158 = vunpack.c.l.b16 %v126
    %v159 = vunpack.c.l.b16 %v127
    %v160 = vunpack.c.l.b16 %v128
    %v161 = vpack.c.b16 %v146, %v145
    %v162 = vpack.c.b16 %v148, %v147
    %v163 = vpack.c.b16 %v150, %v149
    %v164 = vpack.c.b16 %v152, %v151
    %v165 = vpack.c.b16 %v154, %v153
    %v166 = vpack.c.b16 %v156, %v155
    %v167 = vpack.c.b16 %v158, %v157
    %v168 = vpack.c.b16 %v160, %v159
    %177 = vmatprep.subr.bf16.mxu0 0
    %178 = vmatpush1.bf16.msra.mxu0 %v161
    %179 = vmatprep.subr.bf16.mxu0 0
    %180 = vmatpush1.bf16.msra.mxu0 %v162
    %181 = vmatprep.subr.bf16.mxu0 0
    %182 = vmatpush1.bf16.msra.mxu0 %v163
    %183 = vmatprep.subr.bf16.mxu0 0
    %184 = vmatpush1.bf16.msra.mxu0 %v164
    %185 = vmatprep.subr.bf16.mxu0 0
    %186 = vmatpush1.bf16.msra.mxu0 %v165
    %187 = vmatprep.subr.bf16.mxu0 0
    %188 = vmatpush1.bf16.msra.mxu0 %v166
    %189 = vmatprep.subr.bf16.mxu0 0
    %190 = vmatpush1.bf16.msra.mxu0 %v167
    %191 = vmatprep.subr.bf16.mxu0 0
    %192 = vmatpush1.bf16.msra.mxu0 %v168
    %193 = vmatprep.subr.bf16.mxu0 0
    %194 = vmatpush1.bf16.msra.mxu0 0
    %195 = vmatprep.subr.bf16.mxu0 0
    %196 = vmatpush1.bf16.msra.mxu0 0
    %197 = vmatprep.subr.bf16.mxu0 0
    %198 = vmatpush1.bf16.msra.mxu0 0
    %199 = vmatprep.subr.bf16.mxu0 0
    %200 = vmatpush1.bf16.msra.mxu0 0
    %201 = vmatprep.subr.bf16.mxu0 0
    %202 = vmatpush1.bf16.msra.mxu0 0
    %203 = vmatprep.subr.bf16.mxu0 0
    %204 = vmatpush1.bf16.msra.mxu0 0
    %205 = vmatprep.subr.bf16.mxu0 0
    %206 = vmatpush1.bf16.msra.mxu0 0
    %207 = vmatprep.subr.bf16.mxu0 0
    %208 = vmatpush1.bf16.msra.mxu0 0
    %209 = vmatprep.mubr.bf16.mxu0 0
    %210 = vmatmul.mubr.bf16.gmra.mrb[0].mxu0 %v111
    %v211 = vpop.f32.mrb[0].mxu0
    %v212 = vadd.f32 0.0, %v211
    %v213 = vpop.f32.mrb[0].mxu0
    %v214 = vpop.f32.mrb[0].mxu0
    %v215 = vadd.f32 0.0, %v214
    %v216 = vpop.f32.mrb[0].mxu0
    %217 = vmatprep.mubr.bf16.mxu0 0
    %218 = vmatmul.mubr.bf16.gmra.mrb[0].mxu0 %v112
    %v219 = vpop.f32.mrb[0].mxu0
    %v220 = vadd.f32 0.0, %v219
    %v221 = vpop.f32.mrb[0].mxu0
    %v222 = vpop.f32.mrb[0].mxu0
    %v223 = vadd.f32 0.0, %v222
    %v224 = vpop.f32.mrb[0].mxu0
    %225 = vdwg.mxu0
    %v226 = vld [vmem:[%s4] sm:$0x1]
    %v228 = vlaneseq
    %v229 = vshrl.u32 %v228, 7
    %v230 = vsub.s32 0, %v229
    %v231 = vrot.slane %v226, %v230
    %v233 = vmul.f32 %v212, %v231
    %v234 = vmul.f32 %v215, %v231
    %v235 = vmul.f32 %v220, %v231
    %v236 = vmul.f32 %v223, %v231
    %v237 = vld [vmem:[%s5] sm:$0x1]
    %v239 = vlaneseq
    %v240 = vshrl.u32 %v239, 7
    %v241 = vsub.s32 0, %v240
    %v242 = vrot.slane %v237, %v241
    %v244 = vadd.f32 %v233, %v242
    %v245 = vadd.f32 %v234, %v242
    %v246 = vadd.f32 %v235, %v242
    %v247 = vadd.f32 %v236, %v242
    %v248 = vmax.f32 %v244, 0.0
    %v249 = vmax.f32 %v245, 0.0
    %v250 = vmax.f32 %v246, 0.0
    %v251 = vmax.f32 %v247, 0.0
    %v252 = vpack.c.bf16 %v249, %v248
    %v253 = vpack.c.bf16 %v251, %v250
    %v254 = vlaneseq
    %v255 = vshrl.u32 %v254, 7
    %v256 = vadd.s32 %v255, 8
    %v257 = vadd.s32 %v255, 16
    %v258 = vadd.s32 %v255, 24
    %vm259 = vcmp.lt.s32.totalorder %v255, 0
    %v260 = vsub.s32 0, %v255
    %v261 = vsel %vm259, %v260, %v255
    %v262 = vshrl.u32 %v261, 4
    %v263 = vand.u32 %v261, 15
    %v264 = vsub.s32 0, %v263
    %v265 = vsel %vm259, %v264, %v263
    %vm266 = vcmp.lt.s32.totalorder %v256, 0
    %v267 = vsub.s32 0, %v256
    %v268 = vsel %vm266, %v267, %v256
    %v269 = vshrl.u32 %v268, 4
    %v270 = vand.u32 %v268, 15
    %v271 = vsub.s32 0, %v270
    %v272 = vsel %vm266, %v271, %v270
    %vm273 = vcmp.lt.s32.totalorder %v257, 0
    %v274 = vsub.s32 0, %v257
    %v275 = vsel %vm273, %v274, %v257
    %v276 = vshrl.u32 %v275, 4
    %v277 = vand.u32 %v275, 15
    %v278 = vsub.s32 0, %v277
    %v279 = vsel %vm273, %v278, %v277
    %vm280 = vcmp.lt.s32.totalorder %v258, 0
    %v281 = vsub.s32 0, %v258
    %v282 = vsel %vm280, %v281, %v258
    %v283 = vshrl.u32 %v282, 4
    %v284 = vand.u32 %v282, 15
    %v285 = vsub.s32 0, %v284
    %v286 = vsel %vm280, %v285, %v284
    %vm287 = vcmp.ne.s32.totalorder %v265, 0
    %vm288 = vcmp.ne.s32.totalorder %v272, 0
    %vm289 = vcmp.ne.s32.totalorder %v279, 0
    %vm290 = vcmp.ne.s32.totalorder %v286, 0
    %vm291 = vcmp.lt.s32.totalorder %v265, 0
    %vm292 = vcmp.lt.s32.totalorder %v272, 0
    %vm293 = vcmp.lt.s32.totalorder %v279, 0
    %vm294 = vcmp.lt.s32.totalorder %v286, 0
    %vm295 = vmand %vm291, %vm287
    %vm296 = vmand %vm292, %vm288
    %vm297 = vmand %vm293, %vm289
    %vm298 = vmand %vm294, %vm290
    %v299 = vadd.s32 %v265, 16
    %v300 = vadd.s32 %v272, 16
    %v301 = vadd.s32 %v279, 16
    %v302 = vadd.s32 %v286, 16
    %v303 = vsel %vm295, %v299, %v265
    %v304 = vsel %vm296, %v300, %v272
    %v305 = vsel %vm297, %v301, %v279
    %v306 = vsel %vm298, %v302, %v286
    %vm307 = vsmask.f32 256
    %v309 = vshrl.u32 %v252, 16
    %v311 = vrot.slane %v309, 7
    %v312 = vshll.u32 %v252, 16
    %v314 = vor.u32 %v311, %v312
    %v316 = vshrl.u32 %v253, 16
    %v318 = vrot.slane %v316, 7
    %v319 = vshll.u32 %v253, 16
    %v321 = vor.u32 %v318, %v319
    %v322 = vsel %vm307, %v311, %v321
    %vm325 = vcmask 1040384
    %vm326 = vmand %vm325, %vm307
    %v327 = vsel %vm326, 0, %v314
    %vm328 = vsmask.f32 7424
    %v329 = vrot.slane %v312, 1
    %v330 = vor.u32 %v309, %v329
    %v331 = vrot.slane %v319, 1
    %v332 = vsel %vm328, %v330, %v331
    %v333 = vor.u32 %v316, %v331
    %vm336 = vcmask 1047552
    %vm337 = vmand %vm336, %vm328
    %v338 = vsel %vm337, %v333, 0
    %vm339 = vcmp.ne.s32.totalorder %v303, 0
    %vm340 = vcmp.ne.s32.totalorder %v304, 0
    %vm341 = vcmp.ne.s32.totalorder %v305, 0
    %vm342 = vcmp.ne.s32.totalorder %v306, 0
    %v343 = vsel %vm339, 1, 0
    %v344 = vsel %vm340, 1, 0
    %v345 = vsel %vm341, 1, 0
    %v346 = vsel %vm342, 1, 0
    %v347 = vcvt.s32.f32 %v343
    %v348 = vcvt.s32.f32 %v344
    %v349 = vcvt.s32.f32 %v345
    %v350 = vcvt.s32.f32 %v346
    %v351 = vpack.c.bf16 %v348, %v347
    %v352 = vpack.c.bf16 %v350, %v349
    %v353 = vmul.bf16 %v327, %v351
    %v354 = vmul.bf16 %v322, %v352
    %vm355 = vcmp.ne.s32.totalorder %v303, 15
    %vm356 = vcmp.ne.s32.totalorder %v304, 15
    %vm357 = vcmp.ne.s32.totalorder %v305, 15
    %vm358 = vcmp.ne.s32.totalorder %v306, 15
    %v359 = vsel %vm355, 1, 0
    %v360 = vsel %vm356, 1, 0
    %v361 = vsel %vm357, 1, 0
    %v362 = vsel %vm358, 1, 0
    %v363 = vcvt.s32.f32 %v359
    %v364 = vcvt.s32.f32 %v360
    %v365 = vcvt.s32.f32 %v361
    %v366 = vcvt.s32.f32 %v362
    %v367 = vpack.c.bf16 %v364, %v363
    %v368 = vpack.c.bf16 %v366, %v365
    %v369 = vmul.bf16 %v332, %v367
    %v370 = vmul.bf16 %v338, %v368
    %v371 = vld [vmem:[#allocation5] sm:$0xf]
    %v372 = vld [vmem:[#allocation5 + $0x4] sm:$0xf]
    %v373 = vld [vmem:[#allocation5 + $0x8] sm:$0xf]
    %v374 = vld [vmem:[#allocation5 + $0xc] sm:$0xf]
    %v375 = vld [vmem:[#allocation5 + $0x10] sm:$0xf]
    %v376 = vld [vmem:[#allocation5 + $0x14] sm:$0xf]
    %v377 = vld [vmem:[#allocation5 + $0x18] sm:$0xf]
    %v378 = vld [vmem:[#allocation5 + $0x1c] sm:$0xf]
    %v379 = vld [vmem:[#allocation5 + $0x20] sm:$0xf]
    %v380 = vld [vmem:[#allocation5 + $0x24] sm:$0xf]
    %v381 = vld [vmem:[#allocation5 + $0x28] sm:$0xf]
    %v382 = vld [vmem:[#allocation5 + $0x2c] sm:$0xf]
    %v383 = vld [vmem:[#allocation5 + $0x30] sm:$0xf]
    %v384 = vld [vmem:[#allocation5 + $0x34] sm:$0xf]
    %v385 = vld [vmem:[#allocation5 + $0x38] sm:$0xf]
    %v386 = vld [vmem:[#allocation5 + $0x3c] sm:$0xf]
    %v387 = vld [vmem:[#allocation5 + $0x40] sm:$0xf]
    %v388 = vld [vmem:[#allocation5 + $0x44] sm:$0xf]
    %v389 = vld [vmem:[#allocation5 + $0x48] sm:$0xf]
    %v390 = vld [vmem:[#allocation5 + $0x4c] sm:$0xf]
    %v391 = vld [vmem:[#allocation5 + $0x50] sm:$0xf]
    %v392 = vld [vmem:[#allocation5 + $0x54] sm:$0xf]
    %v393 = vld [vmem:[#allocation5 + $0x58] sm:$0xf]
    %v394 = vld [vmem:[#allocation5 + $0x5c] sm:$0xf]
    %v395 = vld [vmem:[#allocation5 + $0x60] sm:$0xf]
    %v396 = vld [vmem:[#allocation5 + $0x64] sm:$0xf]
    %v397 = vld [vmem:[#allocation5 + $0x68] sm:$0xf]
    %v398 = vld [vmem:[#allocation5 + $0x6c] sm:$0xf]
    %v399 = vld [vmem:[#allocation5 + $0x70] sm:$0xf]
    %v400 = vld [vmem:[#allocation5 + $0x74] sm:$0xf]
    %v401 = vld [vmem:[#allocation5 + $0x78] sm:$0xf]
    %v402 = vld [vmem:[#allocation5 + $0x7c] sm:$0xf]
    %v403 = vld [vmem:[#allocation5 + $0x80] sm:$0xf]
    %v404 = vld [vmem:[#allocation5 + $0x84] sm:$0xf]
    %v405 = vld [vmem:[#allocation5 + $0x88] sm:$0xf]
    %v406 = vld [vmem:[#allocation5 + $0x8c] sm:$0xf]
    %v407 = vld [vmem:[#allocation5 + $0x90] sm:$0xf]
    %v408 = vld [vmem:[#allocation5 + $0x94] sm:$0xf]
    %v409 = vld [vmem:[#allocation5 + $0x98] sm:$0xf]
    %v410 = vld [vmem:[#allocation5 + $0x9c] sm:$0xf]
    %v411 = vld [vmem:[#allocation5 + $0xa0] sm:$0xf]
    %v412 = vld [vmem:[#allocation5 + $0xa4] sm:$0xf]
    %v413 = vld [vmem:[#allocation5 + $0xa8] sm:$0xf]
    %v414 = vld [vmem:[#allocation5 + $0xac] sm:$0xf]
    %v415 = vld [vmem:[#allocation5 + $0xb0] sm:$0xf]
    %v416 = vld [vmem:[#allocation5 + $0xb4] sm:$0xf]
    %v417 = vld [vmem:[#allocation5 + $0xb8] sm:$0xf]
    %v418 = vld [vmem:[#allocation5 + $0xbc] sm:$0xf]
    %v467 = vunpack.c.l.b16 %v371
    %v468 = vunpack.c.l.b16 %v372
    %v469 = vunpack.c.l.b16 %v373
    %v470 = vunpack.c.l.b16 %v374
    %v471 = vunpack.c.l.b16 %v375
    %v472 = vunpack.c.l.b16 %v376
    %v473 = vunpack.c.l.b16 %v377
    %v474 = vunpack.c.l.b16 %v378
    %v475 = vunpack.c.l.b16 %v379
    %v476 = vunpack.c.l.b16 %v380
    %v477 = vunpack.c.l.b16 %v381
    %v478 = vunpack.c.l.b16 %v382
    %v479 = vunpack.c.l.b16 %v383
    %v480 = vunpack.c.l.b16 %v384
    %v481 = vunpack.c.l.b16 %v385
    %v482 = vunpack.c.l.b16 %v386
    %v483 = vunpack.c.l.b16 %v387
    %v484 = vunpack.c.l.b16 %v388
    %v485 = vunpack.c.l.b16 %v389
    %v486 = vunpack.c.l.b16 %v390
    %v487 = vunpack.c.l.b16 %v391
    %v488 = vunpack.c.l.b16 %v392
    %v489 = vunpack.c.l.b16 %v393
    %v490 = vunpack.c.l.b16 %v394
    %v491 = vunpack.c.l.b16 %v395
    %v492 = vunpack.c.l.b16 %v396
    %v493 = vunpack.c.l.b16 %v397
    %v494 = vunpack.c.l.b16 %v398
    %v495 = vunpack.c.l.b16 %v399
    %v496 = vunpack.c.l.b16 %v400
    %v497 = vunpack.c.l.b16 %v401
    %v498 = vunpack.c.l.b16 %v402
    %v499 = vunpack.c.l.b16 %v403
    %v500 = vunpack.c.l.b16 %v404
    %v501 = vunpack.c.l.b16 %v405
    %v502 = vunpack.c.l.b16 %v406
    %v503 = vunpack.c.l.b16 %v407
    %v504 = vunpack.c.l.b16 %v408
    %v505 = vunpack.c.l.b16 %v409
    %v506 = vunpack.c.l.b16 %v410
    %v507 = vunpack.c.l.b16 %v411
    %v508 = vunpack.c.l.b16 %v412
    %v509 = vunpack.c.l.b16 %v413
    %v510 = vunpack.c.l.b16 %v414
    %v511 = vunpack.c.l.b16 %v415
    %v512 = vunpack.c.l.b16 %v416
    %v513 = vunpack.c.l.b16 %v417
    %v514 = vunpack.c.l.b16 %v418
    %v515 = vpack.c.b16 %v468, %v467
    %v516 = vpack.c.b16 %v470, %v469
    %v517 = vpack.c.b16 %v472, %v471
    %v518 = vpack.c.b16 %v474, %v473
    %v519 = vpack.c.b16 %v476, %v475
    %v520 = vpack.c.b16 %v478, %v477
    %v521 = vpack.c.b16 %v480, %v479
    %v522 = vpack.c.b16 %v482, %v481
    %v523 = vpack.c.b16 %v484, %v483
    %v524 = vpack.c.b16 %v486, %v485
    %v525 = vpack.c.b16 %v488, %v487
    %v526 = vpack.c.b16 %v490, %v489
    %v527 = vpack.c.b16 %v492, %v491
    %v528 = vpack.c.b16 %v494, %v493
    %v529 = vpack.c.b16 %v496, %v495
    %v530 = vpack.c.b16 %v498, %v497
    %v531 = vpack.c.b16 %v500, %v499
    %v532 = vpack.c.b16 %v502, %v501
    %v533 = vpack.c.b16 %v504, %v503
    %v534 = vpack.c.b16 %v506, %v505
    %v535 = vpack.c.b16 %v508, %v507
    %v536 = vpack.c.b16 %v510, %v509
    %v537 = vpack.c.b16 %v512, %v511
    %v538 = vpack.c.b16 %v514, %v513
    %563 = vmatprep.subr.bf16.mxu0 0
    %564 = vmatpush1.bf16.msra.mxu0 %v515
    %565 = vmatprep.subr.bf16.mxu0 0
    %566 = vmatpush1.bf16.msra.mxu0 %v516
    %567 = vmatprep.subr.bf16.mxu0 0
    %568 = vmatpush1.bf16.msra.mxu0 %v517
    %569 = vmatprep.subr.bf16.mxu0 0
    %570 = vmatpush1.bf16.msra.mxu0 %v518
    %571 = vmatprep.subr.bf16.mxu0 0
    %572 = vmatpush1.bf16.msra.mxu0 %v519
    %573 = vmatprep.subr.bf16.mxu0 0
    %574 = vmatpush1.bf16.msra.mxu0 %v520
    %575 = vmatprep.subr.bf16.mxu0 0
    %576 = vmatpush1.bf16.msra.mxu0 %v521
    %577 = vmatprep.subr.bf16.mxu0 0
    %578 = vmatpush1.bf16.msra.mxu0 %v522
    %579 = vmatprep.subr.bf16.mxu0 0
    %580 = vmatpush1.bf16.msra.mxu0 %v523
    %581 = vmatprep.subr.bf16.mxu0 0
    %582 = vmatpush1.bf16.msra.mxu0 %v524
    %583 = vmatprep.subr.bf16.mxu0 0
    %584 = vmatpush1.bf16.msra.mxu0 %v525
    %585 = vmatprep.subr.bf16.mxu0 0
    %586 = vmatpush1.bf16.msra.mxu0 %v526
    %587 = vmatprep.subr.bf16.mxu0 0
    %588 = vmatpush1.bf16.msra.mxu0 %v527
    %589 = vmatprep.subr.bf16.mxu0 0
    %590 = vmatpush1.bf16.msra.mxu0 %v528
    %591 = vmatprep.subr.bf16.mxu0 0
    %592 = vmatpush1.bf16.msra.mxu0 %v529
    %593 = vmatprep.subr.bf16.mxu0 0
    %594 = vmatpush1.bf16.msra.mxu0 %v530
    %595 = vmatprep.mubr.bf16.mxu0 %v252
    %596 = vmatmul.mubr.bf16.gmra.mrb[0].mxu0 %v353
    %v597 = vpop.f32.mrb[0].mxu0
    %v598 = vadd.f32 0.0, %v597
    %v599 = vpop.f32.mrb[0].mxu0
    %v600 = vpop.f32.mrb[0].mxu0
    %v601 = vadd.f32 0.0, %v600
    %v602 = vpop.f32.mrb[0].mxu0
    %603 = vmatprep.mubr.bf16.mxu0 %v253
    %604 = vmatmul.mubr.bf16.gmra.mrb[0].mxu0 %v354
    %v605 = vpop.f32.mrb[0].mxu0
    %v606 = vadd.f32 0.0, %v605
    %v607 = vpop.f32.mrb[0].mxu0
    %v608 = vpop.f32.mrb[0].mxu0
    %v609 = vadd.f32 0.0, %v608
    %v610 = vpop.f32.mrb[0].mxu0
    %611 = vdwg.mxu0
    %612 = vmatprep.subr.bf16.mxu0 0
    %613 = vmatpush1.bf16.msra.mxu0 %v531
    %614 = vmatprep.subr.bf16.mxu0 0
    %615 = vmatpush1.bf16.msra.mxu0 %v532
    %616 = vmatprep.subr.bf16.mxu0 0
    %617 = vmatpush1.bf16.msra.mxu0 %v533
    %618 = vmatprep.subr.bf16.mxu0 0
    %619 = vmatpush1.bf16.msra.mxu0 %v534
    %620 = vmatprep.subr.bf16.mxu0 0
    %621 = vmatpush1.bf16.msra.mxu0 %v535
    %622 = vmatprep.subr.bf16.mxu0 0
    %623 = vmatpush1.bf16.msra.mxu0 %v536
    %624 = vmatprep.subr.bf16.mxu0 0
    %625 = vmatpush1.bf16.msra.mxu0 %v537
    %626 = vmatprep.subr.bf16.mxu0 0
    %627 = vmatpush1.bf16.msra.mxu0 %v538
    %628 = vmatprep.subr.bf16.mxu0 0
    %629 = vmatpush1.bf16.msra.mxu0 0
    %630 = vmatprep.subr.bf16.mxu0 0
    %631 = vmatpush1.bf16.msra.mxu0 0
    %632 = vmatprep.subr.bf16.mxu0 0
    %633 = vmatpush1.bf16.msra.mxu0 0
    %634 = vmatprep.subr.bf16.mxu0 0
    %635 = vmatpush1.bf16.msra.mxu0 0
    %636 = vmatprep.subr.bf16.mxu0 0
    %637 = vmatpush1.bf16.msra.mxu0 0
    %638 = vmatprep.subr.bf16.mxu0 0
    %639 = vmatpush1.bf16.msra.mxu0 0
    %640 = vmatprep.subr.bf16.mxu0 0
    %641 = vmatpush1.bf16.msra.mxu0 0
    %642 = vmatprep.subr.bf16.mxu0 0
    %643 = vmatpush1.bf16.msra.mxu0 0
    %644 = vmatprep.mubr.bf16.mxu0 0
    %645 = vmatmul.mubr.bf16.gmra.mrb[0].mxu0 %v369
    %v646 = vpop.f32.mrb[0].mxu0
    %v647 = vadd.f32 %v598, %v646
    %v648 = vpop.f32.mrb[0].mxu0
    %v649 = vpop.f32.mrb[0].mxu0
    %v650 = vadd.f32 %v601, %v649
    %v651 = vpop.f32.mrb[0].mxu0
    %652 = vmatprep.mubr.bf16.mxu0 0
    %653 = vmatmul.mubr.bf16.gmra.mrb[0].mxu0 %v370
    %v654 = vpop.f32.mrb[0].mxu0
    %v655 = vadd.f32 %v606, %v654
    %v656 = vpop.f32.mrb[0].mxu0
    %v657 = vpop.f32.mrb[0].mxu0
    %v658 = vadd.f32 %v609, %v657
    %v659 = vpop.f32.mrb[0].mxu0
    %660 = vdwg.mxu0
    %v661 = vld [vmem:[%s7] sm:$0x1]
    %v663 = vlaneseq
    %v664 = vshrl.u32 %v663, 7
    %v665 = vsub.s32 0, %v664
    %v666 = vrot.slane %v661, %v665
    %v668 = vmul.f32 %v647, %v666
    %v669 = vmul.f32 %v650, %v666
    %v670 = vmul.f32 %v655, %v666
    %v671 = vmul.f32 %v658, %v666
    %v672 = vld [vmem:[%s8] sm:$0x1]
    %v674 = vlaneseq
    %v675 = vshrl.u32 %v674, 7
    %v676 = vsub.s32 0, %v675
    %v677 = vrot.slane %v672, %v676
    %v679 = vadd.f32 %v668, %v677
    %v680 = vadd.f32 %v669, %v677
    %v681 = vadd.f32 %v670, %v677
    %v682 = vadd.f32 %v671, %v677
    %v683 = vmax.f32 %v679, 0.0
    %v684 = vmax.f32 %v680, 0.0
    %v685 = vmax.f32 %v681, 0.0
    %v686 = vmax.f32 %v682, 0.0
    %v687 = vpack.c.bf16 %v684, %v683
    %v688 = vpack.c.bf16 %v686, %v685
    %v689 = vld [vmem:[#allocation7] sm:$0xf]
    %v690 = vld [vmem:[#allocation7 + $0x4] sm:$0xf]
    %v691 = vld [vmem:[#allocation7 + $0x8] sm:$0xf]
    %v692 = vld [vmem:[#allocation7 + $0xc] sm:$0xf]
    %v693 = vld [vmem:[#allocation7 + $0x10] sm:$0xf]
    %v694 = vld [vmem:[#allocation7 + $0x14] sm:$0xf]
    %v695 = vld [vmem:[#allocation7 + $0x18] sm:$0xf]
    %v696 = vld [vmem:[#allocation7 + $0x1c] sm:$0xf]
    %v697 = vld [vmem:[#allocation7 + $0x20] sm:$0xf]
    %v698 = vld [vmem:[#allocation7 + $0x24] sm:$0xf]
    %v699 = vld [vmem:[#allocation7 + $0x28] sm:$0xf]
    %v700 = vld [vmem:[#allocation7 + $0x2c] sm:$0xf]
    %v701 = vld [vmem:[#allocation7 + $0x30] sm:$0xf]
    %v702 = vld [vmem:[#allocation7 + $0x34] sm:$0xf]
    %v703 = vld [vmem:[#allocation7 + $0x38] sm:$0xf]
    %v704 = vld [vmem:[#allocation7 + $0x3c] sm:$0xf]
    %v705 = vld [vmem:[%s10] sm:$0x1]
    %v707 = vlaneseq
    %v708 = vshrl.u32 %v707, 7
    %v709 = vsub.s32 0, %v708
    %v710 = vrot.slane %v705, %v709
    %v728 = vunpack.c.l.b16 %v689
    %v729 = vunpack.c.l.b16 %v690
    %v730 = vunpack.c.l.b16 %v691
    %v731 = vunpack.c.l.b16 %v692
    %v732 = vunpack.c.l.b16 %v693
    %v733 = vunpack.c.l.b16 %v694
    %v734 = vunpack.c.l.b16 %v695
    %v735 = vunpack.c.l.b16 %v696
    %v736 = vunpack.c.l.b16 %v697
    %v737 = vunpack.c.l.b16 %v698
    %v738 = vunpack.c.l.b16 %v699
    %v739 = vunpack.c.l.b16 %v700
    %v740 = vunpack.c.l.b16 %v701
    %v741 = vunpack.c.l.b16 %v702
    %v742 = vunpack.c.l.b16 %v703
    %v743 = vunpack.c.l.b16 %v704
    %v744 = vpack.c.b16 %v729, %v728
    %v745 = vpack.c.b16 %v731, %v730
    %v746 = vpack.c.b16 %v733, %v732
    %v747 = vpack.c.b16 %v735, %v734
    %v748 = vpack.c.b16 %v737, %v736
    %v749 = vpack.c.b16 %v739, %v738
    %v750 = vpack.c.b16 %v741, %v740
    %v751 = vpack.c.b16 %v743, %v742
    %760 = vmatprep.subr.bf16.mxu0 0
    %761 = vmatpush1.bf16.msra.mxu0 %v744
    %762 = vmatprep.subr.bf16.mxu0 0
    %763 = vmatpush1.bf16.msra.mxu0 %v745
    %764 = vmatprep.subr.bf16.mxu0 0
    %765 = vmatpush1.bf16.msra.mxu0 %v746
    %766 = vmatprep.subr.bf16.mxu0 0
    %767 = vmatpush1.bf16.msra.mxu0 %v747
    %768 = vmatprep.subr.bf16.mxu0 0
    %769 = vmatpush1.bf16.msra.mxu0 %v748
    %770 = vmatprep.subr.bf16.mxu0 0
    %771 = vmatpush1.bf16.msra.mxu0 %v749
    %772 = vmatprep.subr.bf16.mxu0 0
    %773 = vmatpush1.bf16.msra.mxu0 %v750
    %774 = vmatprep.subr.bf16.mxu0 0
    %775 = vmatpush1.bf16.msra.mxu0 %v751
    %776 = vmatprep.subr.bf16.mxu0 0
    %777 = vmatpush1.bf16.msra.mxu0 0
    %778 = vmatprep.subr.bf16.mxu0 0
    %779 = vmatpush1.bf16.msra.mxu0 0
    %780 = vmatprep.subr.bf16.mxu0 0
    %781 = vmatpush1.bf16.msra.mxu0 0
    %782 = vmatprep.subr.bf16.mxu0 0
    %783 = vmatpush1.bf16.msra.mxu0 0
    %784 = vmatprep.subr.bf16.mxu0 0
    %785 = vmatpush1.bf16.msra.mxu0 0
    %786 = vmatprep.subr.bf16.mxu0 0
    %787 = vmatpush1.bf16.msra.mxu0 0
    %788 = vmatprep.subr.bf16.mxu0 0
    %789 = vmatpush1.bf16.msra.mxu0 0
    %790 = vmatprep.subr.bf16.mxu0 0
    %791 = vmatpush1.bf16.msra.mxu0 0
    %792 = vmatprep.mubr.bf16.mxu0 0
    %793 = vmatmul.mubr.bf16.gmra.mrb[0].mxu0 %v687
    %v794 = vpop.f32.mrb[0].mxu0
    %v795 = vadd.f32 %v710, %v794
    %v796 = vpop.f32.mrb[0].mxu0
    %v797 = vpop.f32.mrb[0].mxu0
    %v798 = vadd.f32 %v710, %v797
    %v799 = vpop.f32.mrb[0].mxu0
    %800 = vmatprep.mubr.bf16.mxu0 0
    %801 = vmatmul.mubr.bf16.gmra.mrb[0].mxu0 %v688
    %v802 = vpop.f32.mrb[0].mxu0
    %v803 = vadd.f32 %v710, %v802
    %v804 = vpop.f32.mrb[0].mxu0
    %v805 = vpop.f32.mrb[0].mxu0
    %v806 = vadd.f32 %v710, %v805
    %v807 = vpop.f32.mrb[0].mxu0
    %808 = vdwg.mxu0
    %v809 = vadd.f32 %v81, %v795
    %v810 = vadd.f32 %v82, %v798
    %v811 = vadd.f32 %v83, %v803
    %v812 = vadd.f32 %v84, %v806
    %813 = vst [vmem:[#allocation8] sm:$0xff] %v809
    %814 = vst [vmem:[#allocation8 + $0x8] sm:$0xff] %v810
    %815 = vst [vmem:[#allocation8 + $0x10] sm:$0xff] %v811
    %816 = vst [vmem:[#allocation8 + $0x18] sm:$0xff] %v812
    // Predicated region
    $region58: #{tpu_custom_call.1} parent=1 // pred_check
      _
    $region59: #{tpu_custom_call.1} parent=1 // pred_check_branch
      %818 = sbr.rel (0) target = $region61
    $region60: #{tpu_custom_call.1} parent=1 // pred_region
      %s820 = ssub.s32 512, 512
      %821 = vsyncadd [#allocation4], %s820
      %s822 = sshll.u32 [#allocation8], 4
      %s823 = int_to_ptr.vmem [resolvable:$true] %s822
      %828 = dma.vmem_to_hbm [thread:$0]  %s823, 512, %s11, [#allocation4], 128, 128, 8
    $region61: #{tpu_custom_call.1} parent=1 // pred_fallthru
      _
    // Predicated region
    $region62: #{tpu_custom_call.1} parent=1 // pred_check
      _
    $region63: #{tpu_custom_call.1} parent=1 // pred_check_branch
      %830 = sbr.rel (0) target = $region65
    $region64: #{tpu_custom_call.1} parent=1 // pred_region
      %831 = dma.done [#allocation4], 512
    $region65: #{tpu_custom_call.1} parent=1 // pred_fallthru
      _
    %832 = vsyncpa [#allocation3], 1
    %833 = vsyncpa [#allocation6], 1
    %834 = vsyncpa [#allocation4], 1

</llo_original>
